<compile_context>
chip_gen: v6e
topology: v6e:2x2x1
jax: 0.10.0
libtpu: 0.0.40
codegen_flags: <defaults>
</compile_context>

<pallas_src>
import jax
import jax.numpy as jnp
from jax.experimental import pallas as pl
from jax.experimental.pallas import tpu as pltpu


def _fusion_kernel(w_ref, x0_ref, x1_ref, o_ref):
    # w_ref : (1, TD)   gate vector tile (broadcasts over batch)
    # x0_ref: (TB, TD)  channel-0 tile
    # x1_ref: (TB, TD)  channel-1 tile
    # o_ref : (TB, TD)
    s = jax.nn.sigmoid(w_ref[...])          # EUP transcendental, ~free slot
    x0 = x0_ref[...]
    x1 = x1_ref[...]
    # lerp form: x1 + s*(x0 - x1) == s*x0 + (1 - s)*x1  (one fewer vmul)
    o_ref[...] = x1 + s * (x0 - x1)


def _pick_tile(total, align, max_tile):
    """Largest tile <= max_tile that is a multiple of `align` and divides
    `total`; falls back to the full extent (block == array dim is always
    legal w.r.t. the (8,128) rule)."""
    if total <= max_tile:
        return total
    t = (max_tile // align) * align
    while t >= align:
        if total % t == 0:
            return t
        t -= align
    return total


def fusion_module_forward(x, weight, *, max_tile_b=256, max_tile_d=2048):
    """x: (B, 2, D) float32, weight: (D,) float32 -> (B, D) float32."""
    B, C, D = x.shape
    assert C == 2, "fusion_module expects exactly 2 input channels"
    assert weight.shape == (D,)

    # Split the channel axis in the wrapper (cheap XLA slices) so the kernel
    # sees clean (batch, feature) tiles: sublane = batch, lane = feature.
    x0 = x[:, 0, :]
    x1 = x[:, 1, :]
    w2d = weight.reshape(1, D)

    tile_b = _pick_tile(B, 8, max_tile_b)
    tile_d = _pick_tile(D, 128, max_tile_d)
    grid = (B // tile_b, D // tile_d)

    return pl.pallas_call(
        _fusion_kernel,
        out_shape=jax.ShapeDtypeStruct((B, D), x.dtype),
        grid=grid,
        in_specs=[
            pl.BlockSpec((1, tile_d), lambda b, d: (0, d)),        # weight
            pl.BlockSpec((tile_b, tile_d), lambda b, d: (b, d)),   # x[:, 0, :]
            pl.BlockSpec((tile_b, tile_d), lambda b, d: (b, d)),   # x[:, 1, :]
        ],
        out_specs=pl.BlockSpec((tile_b, tile_d), lambda b, d: (b, d)),
        compiler_params=pltpu.CompilerParams(
            dimension_semantics=("parallel", "parallel"),
        ),
    )(w2d, x0, x1)


def fusion_module_reference(x, weight):
    s = jax.nn.sigmoid(weight)[None, :]
    return s * x[:, 0, :] + (1.0 - s) * x[:, 1, :]


if __name__ == "__main__":
    # Small shapes consistent with the module: batch=8, channels=2, dim=256.
    B, C, D = 8, 2, 256

    key = jax.random.PRNGKey(0)
    kx, kw = jax.random.split(key)

    x = jax.random.normal(kx, (B, C, D), dtype=jnp.float32)
    # Parameter init mirrors torch.randn(dim) (standard normal), deterministic.
    weight = jax.random.normal(kw, (D,), dtype=jnp.float32)
    # NOTE: self.conv / self.conv_soft weights are never used in forward(),
    # so they are intentionally not materialized here.

    out = fusion_module_forward(x, weight)
    out = jax.block_until_ready(out)

    ref = fusion_module_reference(x, weight)
    assert out.shape == (B, D)
    assert jnp.allclose(out, ref, atol=1e-6, rtol=1e-6)

    print("KERNEL_OK")
</pallas_src>

<mosaic_0001>
module attributes {stable_mosaic.version = 11 : i64} {
  func.func @_fusion_kernel(%arg0: i32, %arg1: i32, %arg2: memref<1x256xf32, #tpu.memory_space<vmem>>, %arg3: memref<8x256xf32, #tpu.memory_space<vmem>>, %arg4: memref<8x256xf32, #tpu.memory_space<vmem>>, %arg5: memref<8x256xf32, #tpu.memory_space<vmem>>) attributes {dimension_semantics = [#tpu.dimension_semantics<parallel>, #tpu.dimension_semantics<parallel>], iteration_bounds = array<i64: 1, 1>, scalar_prefetch = 0 : i64, scratch_operands = 0 : i64, tpu.core_type = #tpu.core_type<tc>, window_params = [{transform_indices = @transform_0, window_bounds = array<i64: 1, 256>}, {transform_indices = @transform_1, window_bounds = array<i64: 8, 256>}, {transform_indices = @transform_2, window_bounds = array<i64: 8, 256>}, {transform_indices = @transform_3, window_bounds = array<i64: 8, 256>}]} {
    %c0 = arith.constant 0 : index
    %c0_0 = arith.constant 0 : index
    %0 = vector.load %arg2[%c0, %c0_0] : memref<1x256xf32, #tpu.memory_space<vmem>>, vector<1x256xf32>
    %1 = arith.negf %0 : vector<1x256xf32>
    %2 = math.exp %1 : vector<1x256xf32>
    %cst = arith.constant 1.000000e+00 : f32
    %3 = vector.broadcast %cst : f32 to vector<1x256xf32>
    %4 = arith.addf %3, %2 : vector<1x256xf32>
    %5 = arith.divf %3, %4 : vector<1x256xf32>
    %c0_1 = arith.constant 0 : index
    %c0_2 = arith.constant 0 : index
    %6 = vector.load %arg3[%c0_1, %c0_2] : memref<8x256xf32, #tpu.memory_space<vmem>>, vector<8x256xf32>
    %c0_3 = arith.constant 0 : index
    %c0_4 = arith.constant 0 : index
    %7 = vector.load %arg4[%c0_3, %c0_4] : memref<8x256xf32, #tpu.memory_space<vmem>>, vector<8x256xf32>
    %8 = arith.subf %6, %7 : vector<8x256xf32>
    %9 = vector.broadcast %5 : vector<1x256xf32> to vector<8x256xf32>
    %10 = arith.mulf %9, %8 : vector<8x256xf32>
    %11 = arith.addf %7, %10 : vector<8x256xf32>
    %c0_5 = arith.constant 0 : index
    %c0_6 = arith.constant 0 : index
    %12 = vector.load %arg5[%c0_5, %c0_6] : memref<8x256xf32, #tpu.memory_space<vmem>>, vector<8x256xf32>
    tpu.vector_store %arg5[%c0_5, %c0_6], %11 {strides = array<i32>} : memref<8x256xf32, #tpu.memory_space<vmem>>, vector<8x256xf32>,
    return
  }
  func.func @transform_0(%arg0: i32, %arg1: i32) -> (i32, i32) {
    %c0_i32 = arith.constant 0 : i32
    %c0_i32_0 = arith.constant 0 : i32
    return %c0_i32, %arg1 : i32, i32
  }
  func.func @transform_1(%arg0: i32, %arg1: i32) -> (i32, i32) {
    %c0_i32 = arith.constant 0 : i32
    return %arg0, %arg1 : i32, i32
  }
  func.func @transform_2(%arg0: i32, %arg1: i32) -> (i32, i32) {
    %c0_i32 = arith.constant 0 : i32
    return %arg0, %arg1 : i32, i32
  }
  func.func @transform_3(%arg0: i32, %arg1: i32) -> (i32, i32) {
    %c0_i32 = arith.constant 0 : i32
    return %arg0, %arg1 : i32, i32
  }
}

</mosaic_0001>

<llo_original>
// kernel: tpu_custom_call.1
$region0: #{tpu_custom_call.1}
  #allocation0 [shape = 'u32[]', space=smem, size = 0x4, offset = 0x4, fixed_abs, tag = 'smem constant byte address 0x4 - core index']
  #allocation1 [shape = 'u32[144,128]{1,0:T(1,128)}', space=vmem, size = 0x12000, scoped, tag = 'internal scratch']
  %s0 = inlined_call_operand.hbm [shape: f32[1,256], index: 0, kind: input, shape index: {}]
  %s1 = inlined_call_operand.hbm [shape: f32[8,256], index: 1, kind: input, shape index: {}]
  %s2 = inlined_call_operand.hbm [shape: f32[8,256], index: 2, kind: input, shape index: {}]
  %s3 = inlined_call_operand.hbm [shape: f32[8,256], index: 3, kind: output, shape index: {}]
  %s4 = sld [smem:[#allocation0]]
  $region34: #{tpu_custom_call.1} parent=0
    _
  %s6 = ssub.s32 1, %s4
  %s7 = scalar_select 0, %s6, %s4
  $region1: #{tpu_custom_call.1} parent=0
    #allocation2 [shape = 'u8[1024]{0}', space=vmem, size = 0x400, scoped, tag = 'input window, operand 0, single buffered']
    #allocation3 [shape = 's32[1]{0}', space=sflag, size = 0x4, scoped, tag = 'scoped memory for tpu_custom_call.1']
    #allocation4 [shape = 's32[1]{0}', space=sflag, size = 0x4, scoped, tag = 'scoped memory for tpu_custom_call.1']
    #allocation5 [shape = 'u8[8192]{0}', space=vmem, size = 0x2000, scoped, tag = 'input window, operand 1, single buffered']
    #allocation6 [shape = 's32[1]{0}', space=sflag, size = 0x4, scoped, tag = 'scoped memory for tpu_custom_call.1']
    #allocation7 [shape = 'u8[8192]{0}', space=vmem, size = 0x2000, scoped, tag = 'input window, operand 2, single buffered']
    #allocation8 [shape = 'u8[8192]{0}', space=vmem, size = 0x2000, scoped, tag = 'output window, operand 0, single buffered']
    %8 = vsyncpa [#allocation3], 0
    %9 = vsyncpa [#allocation6], 0
    %10 = vsyncpa [#allocation4], 0
    // Predicated region
    $region2: #{tpu_custom_call.1} parent=1 // pred_check
      _
    $region3: #{tpu_custom_call.1} parent=1 // pred_check_branch
      %12 = sbr.rel (0) target = $region5
    $region4: #{tpu_custom_call.1} parent=1 // pred_region
      %s14 = ssub.s32 32, 32
      %15 = vsyncadd [#allocation3], %s14
      %s17 = sshll.u32 [#allocation2], 4
      %s18 = int_to_ptr.vmem [resolvable:$true] %s17
      %20 = dma.hbm_to_vmem [thread:$0]  %s0, 32, %s18, [#allocation3]
    $region5: #{tpu_custom_call.1} parent=1 // pred_fallthru
      _
    // Predicated region
    $region6: #{tpu_custom_call.1} parent=1 // pred_check
      _
    $region7: #{tpu_custom_call.1} parent=1 // pred_check_branch
      %22 = sbr.rel (0) target = $region9
    $region8: #{tpu_custom_call.1} parent=1 // pred_region
      %s24 = ssub.s32 256, 256
      %25 = vsyncadd [#allocation6], %s24
      %s27 = sshll.u32 [#allocation5], 4
      %s28 = int_to_ptr.vmem [resolvable:$true] %s27
      %30 = dma.hbm_to_vmem [thread:$0]  %s1, 256, %s28, [#allocation6]
    $region9: #{tpu_custom_call.1} parent=1 // pred_fallthru
      _
    // Predicated region
    $region10: #{tpu_custom_call.1} parent=1 // pred_check
      _
    $region11: #{tpu_custom_call.1} parent=1 // pred_check_branch
      %32 = sbr.rel (0) target = $region13
    $region12: #{tpu_custom_call.1} parent=1 // pred_region
      %s34 = ssub.s32 256, 256
      %35 = vsyncadd [#allocation6], %s34
      %s37 = sshll.u32 [#allocation7], 4
      %s38 = int_to_ptr.vmem [resolvable:$true] %s37
      %40 = dma.hbm_to_vmem [thread:$0]  %s2, 256, %s38, [#allocation6]
    $region13: #{tpu_custom_call.1} parent=1 // pred_fallthru
      _
    // Predicated region
    $region14: #{tpu_custom_call.1} parent=1 // pred_check
      _
    $region15: #{tpu_custom_call.1} parent=1 // pred_check_branch
      %42 = sbr.rel (0) target = $region17
    $region16: #{tpu_custom_call.1} parent=1 // pred_region
      %43 = dma.done [#allocation3], 32
    $region17: #{tpu_custom_call.1} parent=1 // pred_fallthru
      _
    // Predicated region
    $region18: #{tpu_custom_call.1} parent=1 // pred_check
      _
    $region19: #{tpu_custom_call.1} parent=1 // pred_check_branch
      %45 = sbr.rel (0) target = $region21
    $region20: #{tpu_custom_call.1} parent=1 // pred_region
      %46 = dma.done [#allocation6], 256
    $region21: #{tpu_custom_call.1} parent=1 // pred_fallthru
      _
    // Predicated region
    $region22: #{tpu_custom_call.1} parent=1 // pred_check
      _
    $region23: #{tpu_custom_call.1} parent=1 // pred_check_branch
      %48 = sbr.rel (0) target = $region25
    $region24: #{tpu_custom_call.1} parent=1 // pred_region
      %49 = dma.done [#allocation6], 256
    $region25: #{tpu_custom_call.1} parent=1 // pred_fallthru
      _
    %v50 = vld [vmem:[#allocation2] sm:$0x3]
    %v51 = vxor.u32 %v50, 2147483648
    %v52 = vmul.f32 %v51, 1.442695
    %v53 = vpow.pop %v52
    %v54 = vadd.f32 %v53, 1.0
    %v55 = vrcp.pop %v54
    %v56 = vmul.f32 1.0, %v55
    %v57 = vld [vmem:[#allocation5] sm:$0xff]
    %v58 = vld [vmem:[#allocation5 + $0x8] sm:$0xff]
    %v59 = vld [vmem:[#allocation7] sm:$0xff]
    %v60 = vld [vmem:[#allocation7 + $0x8] sm:$0xff]
    %v61 = vsub.f32 %v57, %v59
    %v62 = vsub.f32 %v58, %v60
    %v64 = vlaneseq
    %v65 = vshrl.u32 %v64, 7
    %v66 = vsub.s32 0, %v65
    %v67 = vrot.slane %v56, %v66
    %v68 = vlaneseq
    %v69 = vshrl.u32 %v68, 7
    %v70 = vsub.s32 1, %v69
    %v71 = vrot.slane %v56, %v70
    %v74 = vmul.f32 %v67, %v61
    %v75 = vmul.f32 %v71, %v62
    %v76 = vadd.f32 %v59, %v74
    %v77 = vadd.f32 %v60, %v75
    %78 = vst [vmem:[#allocation8] sm:$0xff] %v76
    %79 = vst [vmem:[#allocation8 + $0x8] sm:$0xff] %v77
    // Predicated region
    $region26: #{tpu_custom_call.1} parent=1 // pred_check
      _
    $region27: #{tpu_custom_call.1} parent=1 // pred_check_branch
      %81 = sbr.rel (0) target = $region29
    $region28: #{tpu_custom_call.1} parent=1 // pred_region
      %s83 = ssub.s32 256, 256
      %84 = vsyncadd [#allocation4], %s83
      %s86 = sshll.u32 [#allocation8], 4
      %s87 = int_to_ptr.vmem [resolvable:$true] %s86
      %89 = dma.vmem_to_hbm [thread:$0]  %s87, 256, %s3, [#allocation4]
    $region29: #{tpu_custom_call.1} parent=1 // pred_fallthru
      _
    // Predicated region
    $region30: #{tpu_custom_call.1} parent=1 // pred_check
      _
    $region31: #{tpu_custom_call.1} parent=1 // pred_check_branch
      %91 = sbr.rel (0) target = $region33
    $region32: #{tpu_custom_call.1} parent=1 // pred_region
      %92 = dma.done [#allocation4], 256
    $region33: #{tpu_custom_call.1} parent=1 // pred_fallthru
      _
    %93 = vsyncpa [#allocation3], 1
    %94 = vsyncpa [#allocation6], 1
    %95 = vsyncpa [#allocation4], 1

</llo_original>
